<compile_context>
chip_gen: v5e
topology: v5e:2x2
jax: 0.10.0
libtpu: 0.0.40
codegen_flags: <defaults>
</compile_context>

<pallas_src>
import functools

import jax
import jax.numpy as jnp
from jax.experimental import pallas as pl
from jax.experimental.pallas import tpu as pltpu


def _round_up(n, m):
    return ((n + m - 1) // m) * m


def linear_beta_kernel(labels_ref, w1_ref, b1_ref, w2_ref, b2_ref,
                       w3_ref, b3_ref, o_ref):
    tb = labels_ref.shape[1]  # batch tile size (lane axis)

    # --- unpack labels (code = lab0 | lab1 << 4) and build transposed one-hot ---
    code = labels_ref[...]                           # (1, TB) int32
    lab0 = jnp.bitwise_and(code, 0xF)                # (1, TB)
    lab1 = jnp.right_shift(code, 4)                  # (1, TB)
    rows = jax.lax.broadcasted_iota(jnp.int32, (20, tb), 0)
    # feature j in [0,10) is hot iff j == lab0; j in [10,20) iff j == lab1 + 10
    target = jnp.where(rows < 10, lab0, lab1 + 10)   # (20, TB)
    x_t = (rows == target).astype(jnp.float32)       # (20, TB)

    hi = jax.lax.Precision.HIGHEST

    # --- fc1 + relu:  h = relu(W1 @ x^T + b1) ---
    h = jnp.dot(w1_ref[...], x_t, precision=hi,
                preferred_element_type=jnp.float32) + b1_ref[...]
    h = jnp.maximum(h, 0.0)                          # (10, TB)

    # --- 3x [fc2 + relu] with shared weights; reads hoisted out of the loop ---
    w2 = w2_ref[...]
    b2 = b2_ref[...]
    for _ in range(3):
        h = jnp.dot(w2, h, precision=hi, preferred_element_type=jnp.float32) + b2
        h = jnp.maximum(h, 0.0)

    # --- fc3 logits, lane-dense (2, TB) store ---
    o_ref[...] = (jnp.dot(w3_ref[...], h, precision=hi,
                          preferred_element_type=jnp.float32)
                  + b3_ref[...]).astype(o_ref.dtype)


def _forward_t_impl(x_labels, params, block_b):
    """Core impl: returns (2, B) lane-dense logits."""
    w1, b1, w2, b2, w3, b3 = params
    B = x_labels.shape[0]

    # Batch tile: multiple of 128 lanes, capped at (padded) batch size and at
    # half the batch (so the grid has >= 2 steps -> both TensorCores on v7x).
    half_cap = max(_round_up((B + 1) // 2, 128), 128)
    tb = min(_round_up(block_b, 128), _round_up(B, 128), half_cap)
    b_pad = _round_up(B, tb)

    # Pack both labels into one int per sample; (B,)->(1,B_pad) is reshape+pad
    # only (no transpose), halving wrapper + kernel input HBM traffic.
    lab = x_labels.astype(jnp.int32)
    code = jnp.bitwise_or(lab[:, 0], jnp.left_shift(lab[:, 1], 4))      # (B,)
    code = jnp.pad(code, (0, b_pad - B)).reshape(1, b_pad)              # (1, B_pad)

    # ~1040 flops / element (fc1 400 + 3*fc2 600 + fc3 40), ~12 B/element HBM.
    weight_bytes = 4 * (10 * 20 + 10 + 10 * 10 + 10 + 2 * 10 + 2)
    cost = pl.CostEstimate(flops=1040 * b_pad, transcendentals=0,
                           bytes_accessed=12 * b_pad + weight_bytes)

    out_t = pl.pallas_call(
        linear_beta_kernel,
        out_shape=jax.ShapeDtypeStruct((2, b_pad), jnp.float32),
        grid=(b_pad // tb,),
        in_specs=[
            pl.BlockSpec((1, tb), lambda i: (0, i)),    # packed labels (move with grid)
            pl.BlockSpec((10, 20), lambda i: (0, 0)),   # w1 (VMEM-resident)
            pl.BlockSpec((10, 1), lambda i: (0, 0)),    # b1
            pl.BlockSpec((10, 10), lambda i: (0, 0)),   # w2
            pl.BlockSpec((10, 1), lambda i: (0, 0)),    # b2
            pl.BlockSpec((2, 10), lambda i: (0, 0)),    # w3
            pl.BlockSpec((2, 1), lambda i: (0, 0)),     # b3
        ],
        out_specs=pl.BlockSpec((2, tb), lambda i: (0, i)),
        compiler_params=pltpu.CompilerParams(
            dimension_semantics=("parallel",),          # shard batch over TCs (v7x)
            vmem_limit_bytes=48 * 1024 * 1024,          # big tiles safe on v5e too
        ),
        cost_estimate=cost,
    )(code, w1, b1, w2, b2, w3, b3)

    return out_t[:, :B]                                  # (2, B), lane-dense


@functools.partial(jax.jit, static_argnames=("block_b",))
def linear_beta_forward_t(x_labels, params, *, block_b=8192):
    """Transposed output: (2, B) logits (no extra HBM transpose pass)."""
    return _forward_t_impl(x_labels, params, block_b)


@functools.partial(jax.jit, static_argnames=("block_b",))
def linear_beta_forward(x_labels, params, *, block_b=8192):
    """PyTorch-compatible output: (B, 2) logits."""
    return _forward_t_impl(x_labels, params, block_b).T


def init_params(key):
    """Deterministic synthetic parameters in PyTorch layout: W (out, in), b (out, 1)."""
    k1, k2, k3, k4, k5, k6 = jax.random.split(key, 6)
    w1 = jax.random.normal(k1, (10, 20), jnp.float32) * 0.2
    b1 = jax.random.normal(k2, (10, 1), jnp.float32) * 0.1
    w2 = jax.random.normal(k3, (10, 10), jnp.float32) * 0.2
    b2 = jax.random.normal(k4, (10, 1), jnp.float32) * 0.1
    w3 = jax.random.normal(k5, (2, 10), jnp.float32) * 0.2
    b3 = jax.random.normal(k6, (2, 1), jnp.float32) * 0.1
    return (w1, b1, w2, b2, w3, b3)


def reference_forward(x_labels, params):
    """Pure-JAX reference (full f32 precision) for correctness checking."""
    w1, b1, w2, b2, w3, b3 = params
    hi = jax.lax.Precision.HIGHEST
    x = jax.nn.one_hot(x_labels, 10, dtype=jnp.float32).reshape(x_labels.shape[0], 20)
    h = jnp.maximum(jnp.dot(x, w1.T, precision=hi) + b1[:, 0], 0.0)
    for _ in range(3):
        h = jnp.maximum(jnp.dot(h, w2.T, precision=hi) + b2[:, 0], 0.0)
    return jnp.dot(h, w3.T, precision=hi) + b3[:, 0]


if __name__ == "__main__":
    key = jax.random.PRNGKey(0)
    kp, kx = jax.random.split(key)
    params = init_params(kp)

    # small shape consistent with the module: batch of label pairs in [0, 10)
    x_labels = jax.random.randint(kx, (8, 2), 0, 10, dtype=jnp.int32)
    out = jax.block_until_ready(linear_beta_forward(x_labels, params))
    ref = reference_forward(x_labels, params)
    assert out.shape == (8, 2)
    assert jnp.allclose(out, ref, atol=1e-5, rtol=1e-5)

    # multi-tile grid + ragged-batch padding path (grid has >= 2 steps)
    x_big = jax.random.randint(jax.random.PRNGKey(1), (300, 2), 0, 10, dtype=jnp.int32)
    out_big = jax.block_until_ready(linear_beta_forward(x_big, params, block_b=128))
    ref_big = reference_forward(x_big, params)
    assert out_big.shape == (300, 2)
    assert jnp.allclose(out_big, ref_big, atol=1e-5, rtol=1e-5)

    # lane-dense (2, B) variant with the default (large) tile size
    out_t = jax.block_until_ready(linear_beta_forward_t(x_big, params))
    assert out_t.shape == (2, 300)
    assert jnp.allclose(out_t.T, ref_big, atol=1e-5, rtol=1e-5)

    print("KERNEL_OK")
</pallas_src>

<mosaic_0001>
module attributes {stable_mosaic.version = 11 : i64} {
  func.func @linear_beta_kernel(%arg0: i32, %arg1: memref<1x128xi32, #tpu.memory_space<vmem>>, %arg2: memref<10x20xf32, #tpu.memory_space<vmem>>, %arg3: memref<10x1xf32, #tpu.memory_space<vmem>>, %arg4: memref<10x10xf32, #tpu.memory_space<vmem>>, %arg5: memref<10x1xf32, #tpu.memory_space<vmem>>, %arg6: memref<2x10xf32, #tpu.memory_space<vmem>>, %arg7: memref<2x1xf32, #tpu.memory_space<vmem>>, %arg8: memref<2x128xf32, #tpu.memory_space<vmem>>) attributes {dimension_semantics = [#tpu.dimension_semantics<parallel>], iteration_bounds = array<i64: 1>, scalar_prefetch = 0 : i64, scratch_operands = 0 : i64, tpu.core_type = #tpu.core_type<tc>, window_params = [{transform_indices = @transform_0, window_bounds = array<i64: 1, 128>}, {pipeline_mode = #tpu.pipeline_mode<synchronous>, transform_indices = @transform_1, window_bounds = array<i64: 10, 20>}, {pipeline_mode = #tpu.pipeline_mode<synchronous>, transform_indices = @transform_2, window_bounds = array<i64: 10, 1>}, {pipeline_mode = #tpu.pipeline_mode<synchronous>, transform_indices = @transform_3, window_bounds = array<i64: 10, 10>}, {pipeline_mode = #tpu.pipeline_mode<synchronous>, transform_indices = @transform_4, window_bounds = array<i64: 10, 1>}, {pipeline_mode = #tpu.pipeline_mode<synchronous>, transform_indices = @transform_5, window_bounds = array<i64: 2, 10>}, {pipeline_mode = #tpu.pipeline_mode<synchronous>, transform_indices = @transform_6, window_bounds = array<i64: 2, 1>}, {transform_indices = @transform_7, window_bounds = array<i64: 2, 128>}]} {
    %c0 = arith.constant 0 : index
    %c0_0 = arith.constant 0 : index
    %0 = vector.load %arg1[%c0, %c0_0] : memref<1x128xi32, #tpu.memory_space<vmem>>, vector<1x128xi32>
    %c15_i32 = arith.constant 15 : i32
    %1 = vector.broadcast %c15_i32 : i32 to vector<1x128xi32>
    %2 = arith.andi %0, %1 : vector<1x128xi32>
    %c4_i32 = arith.constant 4 : i32
    %3 = vector.broadcast %c4_i32 : i32 to vector<1x128xi32>
    %4 = arith.shrsi %0, %3 : vector<1x128xi32>
    %5 = tpu.iota {dimensions = array<i32: 0>} : vector<20x128xi32>
    %c10_i32 = arith.constant 10 : i32
    %6 = vector.broadcast %c10_i32 : i32 to vector<20x128xi32>
    %7 = arith.cmpi slt, %5, %6 : vector<20x128xi32>
    %c10_i32_1 = arith.constant 10 : i32
    %8 = vector.broadcast %c10_i32_1 : i32 to vector<1x128xi32>
    %9 = arith.addi %4, %8 : vector<1x128xi32>
    %10 = vector.shape_cast %2 : vector<1x128xi32> to vector<1x128xi32>
    %11 = vector.broadcast %10 : vector<1x128xi32> to vector<20x128xi32>
    %12 = vector.shape_cast %9 : vector<1x128xi32> to vector<1x128xi32>
    %13 = vector.broadcast %12 : vector<1x128xi32> to vector<20x128xi32>
    %14 = arith.select %7, %11, %13 : vector<20x128xi1>, vector<20x128xi32>
    %15 = arith.cmpi eq, %5, %14 : vector<20x128xi32>
    %16 = arith.extui %15 : vector<20x128xi1> to vector<20x128xi32>
    %17 = arith.sitofp %16 : vector<20x128xi32> to vector<20x128xf32>
    %c0_2 = arith.constant 0 : index
    %c0_3 = arith.constant 0 : index
    %18 = vector.load %arg2[%c0_2, %c0_3] : memref<10x20xf32, #tpu.memory_space<vmem>>, vector<10x20xf32>
    %cst = arith.constant dense<0.000000e+00> : vector<10x128xf32>
    %19 = tpu.matmul %18, %17, %cst {dimension_numbers = #tpu.dot_dimension_numbers<[1], [0], [0], [1], [0, 0, 1, 1], [], []>, precision = #tpu.contract_precision<fp32>} : vector<10x20xf32>, vector<20x128xf32>, vector<10x128xf32> -> vector<10x128xf32>
    %c0_4 = arith.constant 0 : index
    %c0_5 = arith.constant 0 : index
    %20 = vector.load %arg3[%c0_4, %c0_5] : memref<10x1xf32, #tpu.memory_space<vmem>>, vector<10x1xf32>
    %21 = vector.broadcast %20 : vector<10x1xf32> to vector<10x128xf32>
    %22 = arith.addf %19, %21 : vector<10x128xf32>
    %cst_6 = arith.constant 0.000000e+00 : f32
    %23 = vector.broadcast %cst_6 : f32 to vector<10x128xf32>
    %24 = arith.maximumf %22, %23 : vector<10x128xf32>
    %c0_7 = arith.constant 0 : index
    %c0_8 = arith.constant 0 : index
    %25 = vector.load %arg4[%c0_7, %c0_8] : memref<10x10xf32, #tpu.memory_space<vmem>>, vector<10x10xf32>
    %c0_9 = arith.constant 0 : index
    %c0_10 = arith.constant 0 : index
    %26 = vector.load %arg5[%c0_9, %c0_10] : memref<10x1xf32, #tpu.memory_space<vmem>>, vector<10x1xf32>
    %cst_11 = arith.constant dense<0.000000e+00> : vector<10x128xf32>
    %27 = tpu.matmul %25, %24, %cst_11 {dimension_numbers = #tpu.dot_dimension_numbers<[1], [0], [0], [1], [0, 0, 1, 1], [], []>, precision = #tpu.contract_precision<fp32>} : vector<10x10xf32>, vector<10x128xf32>, vector<10x128xf32> -> vector<10x128xf32>
    %28 = vector.broadcast %26 : vector<10x1xf32> to vector<10x128xf32>
    %29 = arith.addf %27, %28 : vector<10x128xf32>
    %cst_12 = arith.constant 0.000000e+00 : f32
    %30 = vector.broadcast %cst_12 : f32 to vector<10x128xf32>
    %31 = arith.maximumf %29, %30 : vector<10x128xf32>
    %cst_13 = arith.constant dense<0.000000e+00> : vector<10x128xf32>
    %32 = tpu.matmul %25, %31, %cst_13 {dimension_numbers = #tpu.dot_dimension_numbers<[1], [0], [0], [1], [0, 0, 1, 1], [], []>, precision = #tpu.contract_precision<fp32>} : vector<10x10xf32>, vector<10x128xf32>, vector<10x128xf32> -> vector<10x128xf32>
    %33 = vector.broadcast %26 : vector<10x1xf32> to vector<10x128xf32>
    %34 = arith.addf %32, %33 : vector<10x128xf32>
    %cst_14 = arith.constant 0.000000e+00 : f32
    %35 = vector.broadcast %cst_14 : f32 to vector<10x128xf32>
    %36 = arith.maximumf %34, %35 : vector<10x128xf32>
    %cst_15 = arith.constant dense<0.000000e+00> : vector<10x128xf32>
    %37 = tpu.matmul %25, %36, %cst_15 {dimension_numbers = #tpu.dot_dimension_numbers<[1], [0], [0], [1], [0, 0, 1, 1], [], []>, precision = #tpu.contract_precision<fp32>} : vector<10x10xf32>, vector<10x128xf32>, vector<10x128xf32> -> vector<10x128xf32>
    %38 = vector.broadcast %26 : vector<10x1xf32> to vector<10x128xf32>
    %39 = arith.addf %37, %38 : vector<10x128xf32>
    %cst_16 = arith.constant 0.000000e+00 : f32
    %40 = vector.broadcast %cst_16 : f32 to vector<10x128xf32>
    %41 = arith.maximumf %39, %40 : vector<10x128xf32>
    %c0_17 = arith.constant 0 : index
    %c0_18 = arith.constant 0 : index
    %42 = vector.load %arg6[%c0_17, %c0_18] : memref<2x10xf32, #tpu.memory_space<vmem>>, vector<2x10xf32>
    %cst_19 = arith.constant dense<0.000000e+00> : vector<2x128xf32>
    %43 = tpu.matmul %42, %41, %cst_19 {dimension_numbers = #tpu.dot_dimension_numbers<[1], [0], [0], [1], [0, 0, 1, 1], [], []>, precision = #tpu.contract_precision<fp32>} : vector<2x10xf32>, vector<10x128xf32>, vector<2x128xf32> -> vector<2x128xf32>
    %c0_20 = arith.constant 0 : index
    %c0_21 = arith.constant 0 : index
    %44 = vector.load %arg7[%c0_20, %c0_21] : memref<2x1xf32, #tpu.memory_space<vmem>>, vector<2x1xf32>
    %45 = vector.broadcast %44 : vector<2x1xf32> to vector<2x128xf32>
    %46 = arith.addf %43, %45 : vector<2x128xf32>
    %c0_22 = arith.constant 0 : index
    %c0_23 = arith.constant 0 : index
    %47 = vector.load %arg8[%c0_22, %c0_23] : memref<2x128xf32, #tpu.memory_space<vmem>>, vector<2x128xf32>
    tpu.vector_store %arg8[%c0_22, %c0_23], %46 {strides = array<i32>} : memref<2x128xf32, #tpu.memory_space<vmem>>, vector<2x128xf32>,
    return
  }
  func.func @transform_0(%arg0: i32) -> (i32, i32) {
    %c0_i32 = arith.constant 0 : i32
    %c0_i32_0 = arith.constant 0 : i32
    return %c0_i32, %arg0 : i32, i32
  }
  func.func @transform_1(%arg0: i32) -> (i32, i32) {
    %c0_i32 = arith.constant 0 : i32
    %c0_i32_0 = arith.constant 0 : i32
    %c0_i32_1 = arith.constant 0 : i32
    return %c0_i32, %c0_i32_0 : i32, i32
  }
  func.func @transform_2(%arg0: i32) -> (i32, i32) {
    %c0_i32 = arith.constant 0 : i32
    %c0_i32_0 = arith.constant 0 : i32
    %c0_i32_1 = arith.constant 0 : i32
    return %c0_i32, %c0_i32_0 : i32, i32
  }
  func.func @transform_3(%arg0: i32) -> (i32, i32) {
    %c0_i32 = arith.constant 0 : i32
    %c0_i32_0 = arith.constant 0 : i32
    %c0_i32_1 = arith.constant 0 : i32
    return %c0_i32, %c0_i32_0 : i32, i32
  }
  func.func @transform_4(%arg0: i32) -> (i32, i32) {
    %c0_i32 = arith.constant 0 : i32
    %c0_i32_0 = arith.constant 0 : i32
    %c0_i32_1 = arith.constant 0 : i32
    return %c0_i32, %c0_i32_0 : i32, i32
  }
  func.func @transform_5(%arg0: i32) -> (i32, i32) {
    %c0_i32 = arith.constant 0 : i32
    %c0_i32_0 = arith.constant 0 : i32
    %c0_i32_1 = arith.constant 0 : i32
    return %c0_i32, %c0_i32_0 : i32, i32
  }
  func.func @transform_6(%arg0: i32) -> (i32, i32) {
    %c0_i32 = arith.constant 0 : i32
    %c0_i32_0 = arith.constant 0 : i32
    %c0_i32_1 = arith.constant 0 : i32
    return %c0_i32, %c0_i32_0 : i32, i32
  }
  func.func @transform_7(%arg0: i32) -> (i32, i32) {
    %c0_i32 = arith.constant 0 : i32
    %c0_i32_0 = arith.constant 0 : i32
    return %c0_i32, %arg0 : i32, i32
  }
}

</mosaic_0001>

<llo_original>
// kernel: linear_beta_forward.1
$region0: #{linear_beta_forward.1}
  #allocation0 [shape = 'u32[]', space=smem, size = 0x4, offset = 0x4, fixed_abs, tag = 'smem constant byte address 0x4 - core index']
  #allocation1 [shape = 'u32[72,128]{1,0:T(1,128)}', space=vmem, size = 0x9000, scoped, tag = 'internal scratch']
  %s0 = inlined_call_operand.vmem [shape: s32[1,128], index: 0, kind: input, shape index: {}]
  %s1 = inlined_call_operand.vmem [shape: f32[10,20], index: 1, kind: input, shape index: {}]
  %s2 = inlined_call_operand.vmem [shape: f32[10,1], index: 2, kind: input, shape index: {}]
  %s3 = inlined_call_operand.vmem [shape: f32[10,10], index: 3, kind: input, shape index: {}]
  %s4 = inlined_call_operand.vmem [shape: f32[10,1], index: 4, kind: input, shape index: {}]
  %s5 = inlined_call_operand.vmem [shape: f32[2,10], index: 5, kind: input, shape index: {}]
  %s6 = inlined_call_operand.vmem [shape: f32[2,1], index: 6, kind: input, shape index: {}]
  %s7 = inlined_call_operand.vmem [shape: f32[2,128], index: 7, kind: output, shape index: {}]
  %s8 = sld [smem:[#allocation0]]
  $region38: #{linear_beta_forward.1} parent=0
    _
  %s10 = ssub.s32 1, %s8
  %s11 = scalar_select 0, %s10, %s8
  // Predicated region
  $region2: #{linear_beta_forward.1} parent=0 // pred_check
    _
  $region3: #{linear_beta_forward.1} parent=0 // pred_check_branch
    %13 = sbr.rel (0) target = $region5
  $region4: #{linear_beta_forward.1} parent=0 // pred_region
    _
  $region5: #{linear_beta_forward.1} parent=0 // pred_fallthru
    _
  // Predicated region
  $region6: #{linear_beta_forward.1} parent=0 // pred_check
    _
  $region7: #{linear_beta_forward.1} parent=0 // pred_check_branch
    %15 = sbr.rel (0) target = $region9
  $region8: #{linear_beta_forward.1} parent=0 // pred_region
    _
  $region9: #{linear_beta_forward.1} parent=0 // pred_fallthru
    _
  // Predicated region
  $region10: #{linear_beta_forward.1} parent=0 // pred_check
    _
  $region11: #{linear_beta_forward.1} parent=0 // pred_check_branch
    %17 = sbr.rel (0) target = $region13
  $region12: #{linear_beta_forward.1} parent=0 // pred_region
    _
  $region13: #{linear_beta_forward.1} parent=0 // pred_fallthru
    _
  // Predicated region
  $region14: #{linear_beta_forward.1} parent=0 // pred_check
    _
  $region15: #{linear_beta_forward.1} parent=0 // pred_check_branch
    %19 = sbr.rel (0) target = $region17
  $region16: #{linear_beta_forward.1} parent=0 // pred_region
    _
  $region17: #{linear_beta_forward.1} parent=0 // pred_fallthru
    _
  // Predicated region
  $region18: #{linear_beta_forward.1} parent=0 // pred_check
    _
  $region19: #{linear_beta_forward.1} parent=0 // pred_check_branch
    %21 = sbr.rel (0) target = $region21
  $region20: #{linear_beta_forward.1} parent=0 // pred_region
    _
  $region21: #{linear_beta_forward.1} parent=0 // pred_fallthru
    _
  // Predicated region
  $region22: #{linear_beta_forward.1} parent=0 // pred_check
    _
  $region23: #{linear_beta_forward.1} parent=0 // pred_check_branch
    %23 = sbr.rel (0) target = $region25
  $region24: #{linear_beta_forward.1} parent=0 // pred_region
    _
  $region25: #{linear_beta_forward.1} parent=0 // pred_fallthru
    _
  // Predicated region
  $region26: #{linear_beta_forward.1} parent=0 // pred_check
    _
  $region27: #{linear_beta_forward.1} parent=0 // pred_check_branch
    %25 = sbr.rel (0) target = $region29
  $region28: #{linear_beta_forward.1} parent=0 // pred_region
    _
  $region29: #{linear_beta_forward.1} parent=0 // pred_fallthru
    _
  %v26 = vld [vmem:[%s0] sm:$0x1]
  %v27 = vand.u32 %v26, 15
  %v28 = vshra.s32 %v26, 4
  %v29 = vlaneseq
  %v30 = vshrl.u32 %v29, 7
  %v31 = vadd.s32 %v30, 8
  %v32 = vadd.s32 %v30, 16
  %vm33 = vcmp.lt.s32.totalorder %v30, 10
  %vm34 = vcmp.lt.s32.totalorder %v31, 10
  %vm35 = vcmp.lt.s32.totalorder %v32, 10
  %v36 = vadd.s32 %v28, 10
  %v37 = vperm.slane %v27, 0
  %v38 = vperm.slane %v36, 0
  %v39 = vsel %vm33, %v37, %v38
  %v40 = vsel %vm34, %v37, %v38
  %v41 = vsel %vm35, %v37, %v38
  %vm42 = vcmp.eq.s32.totalorder %v30, %v39
  %vm43 = vcmp.eq.s32.totalorder %v31, %v40
  %vm44 = vcmp.eq.s32.totalorder %v32, %v41
  %v45 = vsel %vm42, 1, 0
  %v46 = vsel %vm43, 1, 0
  %v47 = vsel %vm44, 1, 0
  %v48 = vcvt.s32.f32 %v45
  %v49 = vcvt.s32.f32 %v46
  %v50 = vcvt.s32.f32 %v47
  %v51 = vld [vmem:[%s1] sm:$0xff]
  %v52 = vld [vmem:[%s1 + $0x8] sm:$0x3]
  %v53 = vld [vmem:[%s2] sm:$0xff]
  %v54 = vld [vmem:[%s2 + $0x8] sm:$0x3]
  %56 = vset.pattern.permute.xlu0 0
  %57 = vperm.xlu0 %56, %v53
  %v58 = vpop.permute.xlu0 %57
  %61 = vset.pattern.permute.xlu0 0
  %62 = vperm.xlu0 %61, %v54
  %v63 = vpop.permute.xlu0 %62
  %vm65 = vcmask 162816
  %v67 = vsel %vm65, %v51, 0
  %v70 = vsel %vm65, %v52, 0
  %vm72 = vcmask 1043456
  %v74 = vsel %vm72, %v50, 0
  %76 = vmatpush.msra.mxu0 0.0
  %77 = vmatpush.msra.mxu0 0.0
  %78 = vmatpush.msra.mxu0 0.0
  %79 = vmatpush.msra.mxu0 0.0
  %80 = vmatpush.msra.mxu0 0.0
  %81 = vmatpush.msra.mxu0 0.0
  %82 = vmatpush.msra.mxu0 0.0
  %83 = vmatpush.msra.mxu0 0.0
  %84 = vmatpush.msra.mxu0 0.0
  %85 = vmatpush.msra.mxu0 0.0
  %86 = vmatpush.msra.mxu0 0.0
  %87 = vmatpush.msra.mxu0 0.0
  %88 = vmatpush.msra.mxu0 0.0
  %v89 = vand.u32 %v74, 4294901760
  %90 = vmatpush.msra.mxu0 %v89
  %v91 = vand.u32 %v49, 4294901760
  %92 = vmatpush.msra.mxu0 %v91
  %v93 = vand.u32 %v48, 4294901760
  %94 = vmatpush.msra.mxu0 %v93
  %v95 = vand.u32 %v67, 4294901760
  %v96 = vsub.f32 %v67, %v95
  %v97 = vand.u32 %v96, 4294901760
  %v98 = vsub.f32 %v96, %v97
  %v99 = vand.u32 %v98, 4294901760
  %100 = vmatmul.f32.gmra.mxu0 %v99
  %v101 = vpop.f32.mrf.mxu0
  %v102 = vadd.f32 %v58, %v101
  %v103 = vand.u32 %v70, 4294901760
  %v104 = vsub.f32 %v70, %v103
  %v105 = vand.u32 %v104, 4294901760
  %v106 = vsub.f32 %v104, %v105
  %v107 = vand.u32 %v106, 4294901760
  %108 = vmatmul.f32.gmra.mxu0 %v107
  %v109 = vpop.f32.mrf.mxu0
  %v110 = vadd.f32 %v63, %v109
  %111 = vdwg.mxu0
  %112 = vmatpush.msra.mxu0 0.0
  %113 = vmatpush.msra.mxu0 0.0
  %114 = vmatpush.msra.mxu0 0.0
  %115 = vmatpush.msra.mxu0 0.0
  %116 = vmatpush.msra.mxu0 0.0
  %117 = vmatpush.msra.mxu0 0.0
  %118 = vmatpush.msra.mxu0 0.0
  %119 = vmatpush.msra.mxu0 0.0
  %120 = vmatpush.msra.mxu0 0.0
  %121 = vmatpush.msra.mxu0 0.0
  %122 = vmatpush.msra.mxu0 0.0
  %123 = vmatpush.msra.mxu0 0.0
  %124 = vmatpush.msra.mxu0 0.0
  %v125 = vand.u32 %v74, 4294901760
  %v126 = vsub.f32 %v74, %v125
  %v127 = vand.u32 %v126, 4294901760
  %v128 = vsub.f32 %v126, %v127
  %v129 = vand.u32 %v128, 4294901760
  %130 = vmatpush.msra.mxu0 %v129
  %v131 = vand.u32 %v49, 4294901760
  %v132 = vsub.f32 %v49, %v131
  %v133 = vand.u32 %v132, 4294901760
  %v134 = vsub.f32 %v132, %v133
  %v135 = vand.u32 %v134, 4294901760
  %136 = vmatpush.msra.mxu0 %v135
  %v137 = vand.u32 %v48, 4294901760
  %v138 = vsub.f32 %v48, %v137
  %v139 = vand.u32 %v138, 4294901760
  %v140 = vsub.f32 %v138, %v139
  %v141 = vand.u32 %v140, 4294901760
  %142 = vmatpush.msra.mxu0 %v141
  %v143 = vand.u32 %v67, 4294901760
  %144 = vmatmul.f32.gmra.mxu0 %v143
  %v145 = vpop.f32.mrf.mxu0
  %v146 = vadd.f32 %v102, %v145
  %v147 = vand.u32 %v70, 4294901760
  %148 = vmatmul.f32.gmra.mxu0 %v147
  %v149 = vpop.f32.mrf.mxu0
  %v150 = vadd.f32 %v110, %v149
  %151 = vdwg.mxu0
  %152 = vmatpush.msra.mxu0 0.0
  %153 = vmatpush.msra.mxu0 0.0
  %154 = vmatpush.msra.mxu0 0.0
  %155 = vmatpush.msra.mxu0 0.0
  %156 = vmatpush.msra.mxu0 0.0
  %157 = vmatpush.msra.mxu0 0.0
  %158 = vmatpush.msra.mxu0 0.0
  %159 = vmatpush.msra.mxu0 0.0
  %160 = vmatpush.msra.mxu0 0.0
  %161 = vmatpush.msra.mxu0 0.0
  %162 = vmatpush.msra.mxu0 0.0
  %163 = vmatpush.msra.mxu0 0.0
  %164 = vmatpush.msra.mxu0 0.0
  %v165 = vand.u32 %v74, 4294901760
  %v166 = vsub.f32 %v74, %v165
  %167 = vmatpush.msra.mxu0 %v166
  %v168 = vand.u32 %v49, 4294901760
  %v169 = vsub.f32 %v49, %v168
  %170 = vmatpush.msra.mxu0 %v169
  %v171 = vand.u32 %v48, 4294901760
  %v172 = vsub.f32 %v48, %v171
  %173 = vmatpush.msra.mxu0 %v172
  %v174 = vand.u32 %v67, 4294901760
  %v175 = vsub.f32 %v67, %v174
  %176 = vmatmul.f32.gmra.mxu0 %v175
  %v177 = vpop.f32.mrf.mxu0
  %v178 = vadd.f32 %v146, %v177
  %v179 = vand.u32 %v70, 4294901760
  %v180 = vsub.f32 %v70, %v179
  %181 = vmatmul.f32.gmra.mxu0 %v180
  %v182 = vpop.f32.mrf.mxu0
  %v183 = vadd.f32 %v150, %v182
  %184 = vdwg.mxu0
  %185 = vmatpush.msra.mxu0 0.0
  %186 = vmatpush.msra.mxu0 0.0
  %187 = vmatpush.msra.mxu0 0.0
  %188 = vmatpush.msra.mxu0 0.0
  %189 = vmatpush.msra.mxu0 0.0
  %190 = vmatpush.msra.mxu0 0.0
  %191 = vmatpush.msra.mxu0 0.0
  %192 = vmatpush.msra.mxu0 0.0
  %193 = vmatpush.msra.mxu0 0.0
  %194 = vmatpush.msra.mxu0 0.0
  %195 = vmatpush.msra.mxu0 0.0
  %196 = vmatpush.msra.mxu0 0.0
  %197 = vmatpush.msra.mxu0 0.0
  %v198 = vand.u32 %v74, 4294901760
  %199 = vmatpush.msra.mxu0 %v198
  %v200 = vand.u32 %v49, 4294901760
  %201 = vmatpush.msra.mxu0 %v200
  %v202 = vand.u32 %v48, 4294901760
  %203 = vmatpush.msra.mxu0 %v202
  %v204 = vand.u32 %v67, 4294901760
  %v205 = vsub.f32 %v67, %v204
  %v206 = vand.u32 %v205, 4294901760
  %207 = vmatmul.f32.gmra.mxu0 %v206
  %v208 = vpop.f32.mrf.mxu0
  %v209 = vadd.f32 %v178, %v208
  %v210 = vand.u32 %v70, 4294901760
  %v211 = vsub.f32 %v70, %v210
  %v212 = vand.u32 %v211, 4294901760
  %213 = vmatmul.f32.gmra.mxu0 %v212
  %v214 = vpop.f32.mrf.mxu0
  %v215 = vadd.f32 %v183, %v214
  %216 = vdwg.mxu0
  %217 = vmatpush.msra.mxu0 0.0
  %218 = vmatpush.msra.mxu0 0.0
  %219 = vmatpush.msra.mxu0 0.0
  %220 = vmatpush.msra.mxu0 0.0
  %221 = vmatpush.msra.mxu0 0.0
  %222 = vmatpush.msra.mxu0 0.0
  %223 = vmatpush.msra.mxu0 0.0
  %224 = vmatpush.msra.mxu0 0.0
  %225 = vmatpush.msra.mxu0 0.0
  %226 = vmatpush.msra.mxu0 0.0
  %227 = vmatpush.msra.mxu0 0.0
  %228 = vmatpush.msra.mxu0 0.0
  %229 = vmatpush.msra.mxu0 0.0
  %v230 = vand.u32 %v74, 4294901760
  %v231 = vsub.f32 %v74, %v230
  %v232 = vand.u32 %v231, 4294901760
  %233 = vmatpush.msra.mxu0 %v232
  %v234 = vand.u32 %v49, 4294901760
  %v235 = vsub.f32 %v49, %v234
  %v236 = vand.u32 %v235, 4294901760
  %237 = vmatpush.msra.mxu0 %v236
  %v238 = vand.u32 %v48, 4294901760
  %v239 = vsub.f32 %v48, %v238
  %v240 = vand.u32 %v239, 4294901760
  %241 = vmatpush.msra.mxu0 %v240
  %v242 = vand.u32 %v67, 4294901760
  %243 = vmatmul.f32.gmra.mxu0 %v242
  %v244 = vpop.f32.mrf.mxu0
  %v245 = vadd.f32 %v209, %v244
  %v246 = vand.u32 %v70, 4294901760
  %247 = vmatmul.f32.gmra.mxu0 %v246
  %v248 = vpop.f32.mrf.mxu0
  %v249 = vadd.f32 %v215, %v248
  %250 = vdwg.mxu0
  %251 = vmatpush.msra.mxu0 0.0
  %252 = vmatpush.msra.mxu0 0.0
  %253 = vmatpush.msra.mxu0 0.0
  %254 = vmatpush.msra.mxu0 0.0
  %255 = vmatpush.msra.mxu0 0.0
  %256 = vmatpush.msra.mxu0 0.0
  %257 = vmatpush.msra.mxu0 0.0
  %258 = vmatpush.msra.mxu0 0.0
  %259 = vmatpush.msra.mxu0 0.0
  %260 = vmatpush.msra.mxu0 0.0
  %261 = vmatpush.msra.mxu0 0.0
  %262 = vmatpush.msra.mxu0 0.0
  %263 = vmatpush.msra.mxu0 0.0
  %v264 = vand.u32 %v74, 4294901760
  %265 = vmatpush.msra.mxu0 %v264
  %v266 = vand.u32 %v49, 4294901760
  %267 = vmatpush.msra.mxu0 %v266
  %v268 = vand.u32 %v48, 4294901760
  %269 = vmatpush.msra.mxu0 %v268
  %v270 = vand.u32 %v67, 4294901760
  %271 = vmatmul.f32.gmra.mxu0 %v270
  %v272 = vpop.f32.mrf.mxu0
  %v273 = vadd.f32 %v245, %v272
  %v274 = vand.u32 %v70, 4294901760
  %275 = vmatmul.f32.gmra.mxu0 %v274
  %v276 = vpop.f32.mrf.mxu0
  %v277 = vadd.f32 %v249, %v276
  %278 = vdwg.mxu0
  %v279 = vmax.f32 %v273, 0.0
  %v280 = vmax.f32 %v277, 0.0
  %v281 = vld [vmem:[%s3] sm:$0xff]
  %v282 = vld [vmem:[%s3 + $0x8] sm:$0x3]
  %v283 = vld [vmem:[%s4] sm:$0xff]
  %v284 = vld [vmem:[%s4 + $0x8] sm:$0x3]
  %286 = vset.pattern.permute.xlu0 0
  %287 = vperm.xlu0 %286, %v283
  %v288 = vpop.permute.xlu0 %287
  %291 = vset.pattern.permute.xlu0 0
  %292 = vperm.xlu0 %291, %v284
  %v293 = vpop.permute.xlu0 %292
  %vm295 = vcmask 80896
  %v297 = vsel %vm295, %v281, 0
  %v300 = vsel %vm295, %v282, 0
  %vm302 = vcmask 1041408
  %v304 = vsel %vm302, %v280, 0
  %306 = vmatpush.msra.mxu0 0.0
  %307 = vmatpush.msra.mxu0 0.0
  %308 = vmatpush.msra.mxu0 0.0
  %309 = vmatpush.msra.mxu0 0.0
  %310 = vmatpush.msra.mxu0 0.0
  %311 = vmatpush.msra.mxu0 0.0
  %312 = vmatpush.msra.mxu0 0.0
  %313 = vmatpush.msra.mxu0 0.0
  %314 = vmatpush.msra.mxu0 0.0
  %315 = vmatpush.msra.mxu0 0.0
  %316 = vmatpush.msra.mxu0 0.0
  %317 = vmatpush.msra.mxu0 0.0
  %318 = vmatpush.msra.mxu0 0.0
  %319 = vmatpush.msra.mxu0 0.0
  %v320 = vand.u32 %v304, 4294901760
  %321 = vmatpush.msra.mxu0 %v320
  %v322 = vand.u32 %v279, 4294901760
  %323 = vmatpush.msra.mxu0 %v322
  %v324 = vand.u32 %v297, 4294901760
  %v325 = vsub.f32 %v297, %v324
  %v326 = vand.u32 %v325, 4294901760
  %v327 = vsub.f32 %v325, %v326
  %v328 = vand.u32 %v327, 4294901760
  %329 = vmatmul.f32.gmra.mxu0 %v328
  %v330 = vpop.f32.mrf.mxu0
  %v331 = vadd.f32 %v288, %v330
  %v332 = vand.u32 %v300, 4294901760
  %v333 = vsub.f32 %v300, %v332
  %v334 = vand.u32 %v333, 4294901760
  %v335 = vsub.f32 %v333, %v334
  %v336 = vand.u32 %v335, 4294901760
  %337 = vmatmul.f32.gmra.mxu0 %v336
  %v338 = vpop.f32.mrf.mxu0
  %v339 = vadd.f32 %v293, %v338
  %340 = vdwg.mxu0
  %341 = vmatpush.msra.mxu0 0.0
  %342 = vmatpush.msra.mxu0 0.0
  %343 = vmatpush.msra.mxu0 0.0
  %344 = vmatpush.msra.mxu0 0.0
  %345 = vmatpush.msra.mxu0 0.0
  %346 = vmatpush.msra.mxu0 0.0
  %347 = vmatpush.msra.mxu0 0.0
  %348 = vmatpush.msra.mxu0 0.0
  %349 = vmatpush.msra.mxu0 0.0
  %350 = vmatpush.msra.mxu0 0.0
  %351 = vmatpush.msra.mxu0 0.0
  %352 = vmatpush.msra.mxu0 0.0
  %353 = vmatpush.msra.mxu0 0.0
  %354 = vmatpush.msra.mxu0 0.0
  %v355 = vand.u32 %v304, 4294901760
  %v356 = vsub.f32 %v304, %v355
  %v357 = vand.u32 %v356, 4294901760
  %v358 = vsub.f32 %v356, %v357
  %v359 = vand.u32 %v358, 4294901760
  %360 = vmatpush.msra.mxu0 %v359
  %v361 = vand.u32 %v279, 4294901760
  %v362 = vsub.f32 %v279, %v361
  %v363 = vand.u32 %v362, 4294901760
  %v364 = vsub.f32 %v362, %v363
  %v365 = vand.u32 %v364, 4294901760
  %366 = vmatpush.msra.mxu0 %v365
  %v367 = vand.u32 %v297, 4294901760
  %368 = vmatmul.f32.gmra.mxu0 %v367
  %v369 = vpop.f32.mrf.mxu0
  %v370 = vadd.f32 %v331, %v369
  %v371 = vand.u32 %v300, 4294901760
  %372 = vmatmul.f32.gmra.mxu0 %v371
  %v373 = vpop.f32.mrf.mxu0
  %v374 = vadd.f32 %v339, %v373
  %375 = vdwg.mxu0
  %376 = vmatpush.msra.mxu0 0.0
  %377 = vmatpush.msra.mxu0 0.0
  %378 = vmatpush.msra.mxu0 0.0
  %379 = vmatpush.msra.mxu0 0.0
  %380 = vmatpush.msra.mxu0 0.0
  %381 = vmatpush.msra.mxu0 0.0
  %382 = vmatpush.msra.mxu0 0.0
  %383 = vmatpush.msra.mxu0 0.0
  %384 = vmatpush.msra.mxu0 0.0
  %385 = vmatpush.msra.mxu0 0.0
  %386 = vmatpush.msra.mxu0 0.0
  %387 = vmatpush.msra.mxu0 0.0
  %388 = vmatpush.msra.mxu0 0.0
  %389 = vmatpush.msra.mxu0 0.0
  %v390 = vand.u32 %v304, 4294901760
  %v391 = vsub.f32 %v304, %v390
  %392 = vmatpush.msra.mxu0 %v391
  %v393 = vand.u32 %v279, 4294901760
  %v394 = vsub.f32 %v279, %v393
  %395 = vmatpush.msra.mxu0 %v394
  %v396 = vand.u32 %v297, 4294901760
  %v397 = vsub.f32 %v297, %v396
  %398 = vmatmul.f32.gmra.mxu0 %v397
  %v399 = vpop.f32.mrf.mxu0
  %v400 = vadd.f32 %v370, %v399
  %v401 = vand.u32 %v300, 4294901760
  %v402 = vsub.f32 %v300, %v401
  %403 = vmatmul.f32.gmra.mxu0 %v402
  %v404 = vpop.f32.mrf.mxu0
  %v405 = vadd.f32 %v374, %v404
  %406 = vdwg.mxu0
  %407 = vmatpush.msra.mxu0 0.0
  %408 = vmatpush.msra.mxu0 0.0
  %409 = vmatpush.msra.mxu0 0.0
  %410 = vmatpush.msra.mxu0 0.0
  %411 = vmatpush.msra.mxu0 0.0
  %412 = vmatpush.msra.mxu0 0.0
  %413 = vmatpush.msra.mxu0 0.0
  %414 = vmatpush.msra.mxu0 0.0
  %415 = vmatpush.msra.mxu0 0.0
  %416 = vmatpush.msra.mxu0 0.0
  %417 = vmatpush.msra.mxu0 0.0
  %418 = vmatpush.msra.mxu0 0.0
  %419 = vmatpush.msra.mxu0 0.0
  %420 = vmatpush.msra.mxu0 0.0
  %v421 = vand.u32 %v304, 4294901760
  %422 = vmatpush.msra.mxu0 %v421
  %v423 = vand.u32 %v279, 4294901760
  %424 = vmatpush.msra.mxu0 %v423
  %v425 = vand.u32 %v297, 4294901760
  %v426 = vsub.f32 %v297, %v425
  %v427 = vand.u32 %v426, 4294901760
  %428 = vmatmul.f32.gmra.mxu0 %v427
  %v429 = vpop.f32.mrf.mxu0
  %v430 = vadd.f32 %v400, %v429
  %v431 = vand.u32 %v300, 4294901760
  %v432 = vsub.f32 %v300, %v431
  %v433 = vand.u32 %v432, 4294901760
  %434 = vmatmul.f32.gmra.mxu0 %v433
  %v435 = vpop.f32.mrf.mxu0
  %v436 = vadd.f32 %v405, %v435
  %437 = vdwg.mxu0
  %438 = vmatpush.msra.mxu0 0.0
  %439 = vmatpush.msra.mxu0 0.0
  %440 = vmatpush.msra.mxu0 0.0
  %441 = vmatpush.msra.mxu0 0.0
  %442 = vmatpush.msra.mxu0 0.0
  %443 = vmatpush.msra.mxu0 0.0
  %444 = vmatpush.msra.mxu0 0.0
  %445 = vmatpush.msra.mxu0 0.0
  %446 = vmatpush.msra.mxu0 0.0
  %447 = vmatpush.msra.mxu0 0.0
  %448 = vmatpush.msra.mxu0 0.0
  %449 = vmatpush.msra.mxu0 0.0
  %450 = vmatpush.msra.mxu0 0.0
  %451 = vmatpush.msra.mxu0 0.0
  %v452 = vand.u32 %v304, 4294901760
  %v453 = vsub.f32 %v304, %v452
  %v454 = vand.u32 %v453, 4294901760
  %455 = vmatpush.msra.mxu0 %v454
  %v456 = vand.u32 %v279, 4294901760
  %v457 = vsub.f32 %v279, %v456
  %v458 = vand.u32 %v457, 4294901760
  %459 = vmatpush.msra.mxu0 %v458
  %v460 = vand.u32 %v297, 4294901760
  %461 = vmatmul.f32.gmra.mxu0 %v460
  %v462 = vpop.f32.mrf.mxu0
  %v463 = vadd.f32 %v430, %v462
  %v464 = vand.u32 %v300, 4294901760
  %465 = vmatmul.f32.gmra.mxu0 %v464
  %v466 = vpop.f32.mrf.mxu0
  %v467 = vadd.f32 %v436, %v466
  %468 = vdwg.mxu0
  %469 = vmatpush.msra.mxu0 0.0
  %470 = vmatpush.msra.mxu0 0.0
  %471 = vmatpush.msra.mxu0 0.0
  %472 = vmatpush.msra.mxu0 0.0
  %473 = vmatpush.msra.mxu0 0.0
  %474 = vmatpush.msra.mxu0 0.0
  %475 = vmatpush.msra.mxu0 0.0
  %476 = vmatpush.msra.mxu0 0.0
  %477 = vmatpush.msra.mxu0 0.0
  %478 = vmatpush.msra.mxu0 0.0
  %479 = vmatpush.msra.mxu0 0.0
  %480 = vmatpush.msra.mxu0 0.0
  %481 = vmatpush.msra.mxu0 0.0
  %482 = vmatpush.msra.mxu0 0.0
  %v483 = vand.u32 %v304, 4294901760
  %484 = vmatpush.msra.mxu0 %v483
  %v485 = vand.u32 %v279, 4294901760
  %486 = vmatpush.msra.mxu0 %v485
  %v487 = vand.u32 %v297, 4294901760
  %488 = vmatmul.f32.gmra.mxu0 %v487
  %v489 = vpop.f32.mrf.mxu0
  %v490 = vadd.f32 %v463, %v489
  %v491 = vand.u32 %v300, 4294901760
  %492 = vmatmul.f32.gmra.mxu0 %v491
  %v493 = vpop.f32.mrf.mxu0
  %v494 = vadd.f32 %v467, %v493
  %495 = vdwg.mxu0
  %v496 = vmax.f32 %v490, 0.0
  %v497 = vmax.f32 %v494, 0.0
  %v499 = vsel %vm302, %v497, 0
  %501 = vmatpush.msra.mxu0 0.0
  %502 = vmatpush.msra.mxu0 0.0
  %503 = vmatpush.msra.mxu0 0.0
  %504 = vmatpush.msra.mxu0 0.0
  %505 = vmatpush.msra.mxu0 0.0
  %506 = vmatpush.msra.mxu0 0.0
  %507 = vmatpush.msra.mxu0 0.0
  %508 = vmatpush.msra.mxu0 0.0
  %509 = vmatpush.msra.mxu0 0.0
  %510 = vmatpush.msra.mxu0 0.0
  %511 = vmatpush.msra.mxu0 0.0
  %512 = vmatpush.msra.mxu0 0.0
  %513 = vmatpush.msra.mxu0 0.0
  %514 = vmatpush.msra.mxu0 0.0
  %v515 = vand.u32 %v499, 4294901760
  %516 = vmatpush.msra.mxu0 %v515
  %v517 = vand.u32 %v496, 4294901760
  %518 = vmatpush.msra.mxu0 %v517
  %v519 = vand.u32 %v297, 4294901760
  %v520 = vsub.f32 %v297, %v519
  %v521 = vand.u32 %v520, 4294901760
  %v522 = vsub.f32 %v520, %v521
  %v523 = vand.u32 %v522, 4294901760
  %524 = vmatmul.f32.gmra.mxu0 %v523
  %v525 = vpop.f32.mrf.mxu0
  %v526 = vadd.f32 %v288, %v525
  %v527 = vand.u32 %v300, 4294901760
  %v528 = vsub.f32 %v300, %v527
  %v529 = vand.u32 %v528, 4294901760
  %v530 = vsub.f32 %v528, %v529
  %v531 = vand.u32 %v530, 4294901760
  %532 = vmatmul.f32.gmra.mxu0 %v531
  %v533 = vpop.f32.mrf.mxu0
  %v534 = vadd.f32 %v293, %v533
  %535 = vdwg.mxu0
  %536 = vmatpush.msra.mxu0 0.0
  %537 = vmatpush.msra.mxu0 0.0
  %538 = vmatpush.msra.mxu0 0.0
  %539 = vmatpush.msra.mxu0 0.0
  %540 = vmatpush.msra.mxu0 0.0
  %541 = vmatpush.msra.mxu0 0.0
  %542 = vmatpush.msra.mxu0 0.0
  %543 = vmatpush.msra.mxu0 0.0
  %544 = vmatpush.msra.mxu0 0.0
  %545 = vmatpush.msra.mxu0 0.0
  %546 = vmatpush.msra.mxu0 0.0
  %547 = vmatpush.msra.mxu0 0.0
  %548 = vmatpush.msra.mxu0 0.0
  %549 = vmatpush.msra.mxu0 0.0
  %v550 = vand.u32 %v499, 4294901760
  %v551 = vsub.f32 %v499, %v550
  %v552 = vand.u32 %v551, 4294901760
  %v553 = vsub.f32 %v551, %v552
  %v554 = vand.u32 %v553, 4294901760
  %555 = vmatpush.msra.mxu0 %v554
  %v556 = vand.u32 %v496, 4294901760
  %v557 = vsub.f32 %v496, %v556
  %v558 = vand.u32 %v557, 4294901760
  %v559 = vsub.f32 %v557, %v558
  %v560 = vand.u32 %v559, 4294901760
  %561 = vmatpush.msra.mxu0 %v560
  %v562 = vand.u32 %v297, 4294901760
  %563 = vmatmul.f32.gmra.mxu0 %v562
  %v564 = vpop.f32.mrf.mxu0
  %v565 = vadd.f32 %v526, %v564
  %v566 = vand.u32 %v300, 4294901760
  %567 = vmatmul.f32.gmra.mxu0 %v566
  %v568 = vpop.f32.mrf.mxu0
  %v569 = vadd.f32 %v534, %v568
  %570 = vdwg.mxu0
  %571 = vmatpush.msra.mxu0 0.0
  %572 = vmatpush.msra.mxu0 0.0
  %573 = vmatpush.msra.mxu0 0.0
  %574 = vmatpush.msra.mxu0 0.0
  %575 = vmatpush.msra.mxu0 0.0
  %576 = vmatpush.msra.mxu0 0.0
  %577 = vmatpush.msra.mxu0 0.0
  %578 = vmatpush.msra.mxu0 0.0
  %579 = vmatpush.msra.mxu0 0.0
  %580 = vmatpush.msra.mxu0 0.0
  %581 = vmatpush.msra.mxu0 0.0
  %582 = vmatpush.msra.mxu0 0.0
  %583 = vmatpush.msra.mxu0 0.0
  %584 = vmatpush.msra.mxu0 0.0
  %v585 = vand.u32 %v499, 4294901760
  %v586 = vsub.f32 %v499, %v585
  %587 = vmatpush.msra.mxu0 %v586
  %v588 = vand.u32 %v496, 4294901760
  %v589 = vsub.f32 %v496, %v588
  %590 = vmatpush.msra.mxu0 %v589
  %v591 = vand.u32 %v297, 4294901760
  %v592 = vsub.f32 %v297, %v591
  %593 = vmatmul.f32.gmra.mxu0 %v592
  %v594 = vpop.f32.mrf.mxu0
  %v595 = vadd.f32 %v565, %v594
  %v596 = vand.u32 %v300, 4294901760
  %v597 = vsub.f32 %v300, %v596
  %598 = vmatmul.f32.gmra.mxu0 %v597
  %v599 = vpop.f32.mrf.mxu0
  %v600 = vadd.f32 %v569, %v599
  %601 = vdwg.mxu0
  %602 = vmatpush.msra.mxu0 0.0
  %603 = vmatpush.msra.mxu0 0.0
  %604 = vmatpush.msra.mxu0 0.0
  %605 = vmatpush.msra.mxu0 0.0
  %606 = vmatpush.msra.mxu0 0.0
  %607 = vmatpush.msra.mxu0 0.0
  %608 = vmatpush.msra.mxu0 0.0
  %609 = vmatpush.msra.mxu0 0.0
  %610 = vmatpush.msra.mxu0 0.0
  %611 = vmatpush.msra.mxu0 0.0
  %612 = vmatpush.msra.mxu0 0.0
  %613 = vmatpush.msra.mxu0 0.0
  %614 = vmatpush.msra.mxu0 0.0
  %615 = vmatpush.msra.mxu0 0.0
  %v616 = vand.u32 %v499, 4294901760
  %617 = vmatpush.msra.mxu0 %v616
  %v618 = vand.u32 %v496, 4294901760
  %619 = vmatpush.msra.mxu0 %v618
  %v620 = vand.u32 %v297, 4294901760
  %v621 = vsub.f32 %v297, %v620
  %v622 = vand.u32 %v621, 4294901760
  %623 = vmatmul.f32.gmra.mxu0 %v622
  %v624 = vpop.f32.mrf.mxu0
  %v625 = vadd.f32 %v595, %v624
  %v626 = vand.u32 %v300, 4294901760
  %v627 = vsub.f32 %v300, %v626
  %v628 = vand.u32 %v627, 4294901760
  %629 = vmatmul.f32.gmra.mxu0 %v628
  %v630 = vpop.f32.mrf.mxu0
  %v631 = vadd.f32 %v600, %v630
  %632 = vdwg.mxu0
  %633 = vmatpush.msra.mxu0 0.0
  %634 = vmatpush.msra.mxu0 0.0
  %635 = vmatpush.msra.mxu0 0.0
  %636 = vmatpush.msra.mxu0 0.0
  %637 = vmatpush.msra.mxu0 0.0
  %638 = vmatpush.msra.mxu0 0.0
  %639 = vmatpush.msra.mxu0 0.0
  %640 = vmatpush.msra.mxu0 0.0
  %641 = vmatpush.msra.mxu0 0.0
  %642 = vmatpush.msra.mxu0 0.0
  %643 = vmatpush.msra.mxu0 0.0
  %644 = vmatpush.msra.mxu0 0.0
  %645 = vmatpush.msra.mxu0 0.0
  %646 = vmatpush.msra.mxu0 0.0
  %v647 = vand.u32 %v499, 4294901760
  %v648 = vsub.f32 %v499, %v647
  %v649 = vand.u32 %v648, 4294901760
  %650 = vmatpush.msra.mxu0 %v649
  %v651 = vand.u32 %v496, 4294901760
  %v652 = vsub.f32 %v496, %v651
  %v653 = vand.u32 %v652, 4294901760
  %654 = vmatpush.msra.mxu0 %v653
  %v655 = vand.u32 %v297, 4294901760
  %656 = vmatmul.f32.gmra.mxu0 %v655
  %v657 = vpop.f32.mrf.mxu0
  %v658 = vadd.f32 %v625, %v657
  %v659 = vand.u32 %v300, 4294901760
  %660 = vmatmul.f32.gmra.mxu0 %v659
  %v661 = vpop.f32.mrf.mxu0
  %v662 = vadd.f32 %v631, %v661
  %663 = vdwg.mxu0
  %664 = vmatpush.msra.mxu0 0.0
  %665 = vmatpush.msra.mxu0 0.0
  %666 = vmatpush.msra.mxu0 0.0
  %667 = vmatpush.msra.mxu0 0.0
  %668 = vmatpush.msra.mxu0 0.0
  %669 = vmatpush.msra.mxu0 0.0
  %670 = vmatpush.msra.mxu0 0.0
  %671 = vmatpush.msra.mxu0 0.0
  %672 = vmatpush.msra.mxu0 0.0
  %673 = vmatpush.msra.mxu0 0.0
  %674 = vmatpush.msra.mxu0 0.0
  %675 = vmatpush.msra.mxu0 0.0
  %676 = vmatpush.msra.mxu0 0.0
  %677 = vmatpush.msra.mxu0 0.0
  %v678 = vand.u32 %v499, 4294901760
  %679 = vmatpush.msra.mxu0 %v678
  %v680 = vand.u32 %v496, 4294901760
  %681 = vmatpush.msra.mxu0 %v680
  %v682 = vand.u32 %v297, 4294901760
  %683 = vmatmul.f32.gmra.mxu0 %v682
  %v684 = vpop.f32.mrf.mxu0
  %v685 = vadd.f32 %v658, %v684
  %v686 = vand.u32 %v300, 4294901760
  %687 = vmatmul.f32.gmra.mxu0 %v686
  %v688 = vpop.f32.mrf.mxu0
  %v689 = vadd.f32 %v662, %v688
  %690 = vdwg.mxu0
  %v691 = vmax.f32 %v685, 0.0
  %v692 = vmax.f32 %v689, 0.0
  %v694 = vsel %vm302, %v692, 0
  %696 = vmatpush.msra.mxu0 0.0
  %697 = vmatpush.msra.mxu0 0.0
  %698 = vmatpush.msra.mxu0 0.0
  %699 = vmatpush.msra.mxu0 0.0
  %700 = vmatpush.msra.mxu0 0.0
  %701 = vmatpush.msra.mxu0 0.0
  %702 = vmatpush.msra.mxu0 0.0
  %703 = vmatpush.msra.mxu0 0.0
  %704 = vmatpush.msra.mxu0 0.0
  %705 = vmatpush.msra.mxu0 0.0
  %706 = vmatpush.msra.mxu0 0.0
  %707 = vmatpush.msra.mxu0 0.0
  %708 = vmatpush.msra.mxu0 0.0
  %709 = vmatpush.msra.mxu0 0.0
  %v710 = vand.u32 %v694, 4294901760
  %711 = vmatpush.msra.mxu0 %v710
  %v712 = vand.u32 %v691, 4294901760
  %713 = vmatpush.msra.mxu0 %v712
  %v714 = vand.u32 %v297, 4294901760
  %v715 = vsub.f32 %v297, %v714
  %v716 = vand.u32 %v715, 4294901760
  %v717 = vsub.f32 %v715, %v716
  %v718 = vand.u32 %v717, 4294901760
  %719 = vmatmul.f32.gmra.mxu0 %v718
  %v720 = vpop.f32.mrf.mxu0
  %v721 = vadd.f32 %v288, %v720
  %v722 = vand.u32 %v300, 4294901760
  %v723 = vsub.f32 %v300, %v722
  %v724 = vand.u32 %v723, 4294901760
  %v725 = vsub.f32 %v723, %v724
  %v726 = vand.u32 %v725, 4294901760
  %727 = vmatmul.f32.gmra.mxu0 %v726
  %v728 = vpop.f32.mrf.mxu0
  %v729 = vadd.f32 %v293, %v728
  %730 = vdwg.mxu0
  %731 = vmatpush.msra.mxu0 0.0
  %732 = vmatpush.msra.mxu0 0.0
  %733 = vmatpush.msra.mxu0 0.0
  %734 = vmatpush.msra.mxu0 0.0
  %735 = vmatpush.msra.mxu0 0.0
  %736 = vmatpush.msra.mxu0 0.0
  %737 = vmatpush.msra.mxu0 0.0
  %738 = vmatpush.msra.mxu0 0.0
  %739 = vmatpush.msra.mxu0 0.0
  %740 = vmatpush.msra.mxu0 0.0
  %741 = vmatpush.msra.mxu0 0.0
  %742 = vmatpush.msra.mxu0 0.0
  %743 = vmatpush.msra.mxu0 0.0
  %744 = vmatpush.msra.mxu0 0.0
  %v745 = vand.u32 %v694, 4294901760
  %v746 = vsub.f32 %v694, %v745
  %v747 = vand.u32 %v746, 4294901760
  %v748 = vsub.f32 %v746, %v747
  %v749 = vand.u32 %v748, 4294901760
  %750 = vmatpush.msra.mxu0 %v749
  %v751 = vand.u32 %v691, 4294901760
  %v752 = vsub.f32 %v691, %v751
  %v753 = vand.u32 %v752, 4294901760
  %v754 = vsub.f32 %v752, %v753
  %v755 = vand.u32 %v754, 4294901760
  %756 = vmatpush.msra.mxu0 %v755
  %v757 = vand.u32 %v297, 4294901760
  %758 = vmatmul.f32.gmra.mxu0 %v757
  %v759 = vpop.f32.mrf.mxu0
  %v760 = vadd.f32 %v721, %v759
  %v761 = vand.u32 %v300, 4294901760
  %762 = vmatmul.f32.gmra.mxu0 %v761
  %v763 = vpop.f32.mrf.mxu0
  %v764 = vadd.f32 %v729, %v763
  %765 = vdwg.mxu0
  %766 = vmatpush.msra.mxu0 0.0
  %767 = vmatpush.msra.mxu0 0.0
  %768 = vmatpush.msra.mxu0 0.0
  %769 = vmatpush.msra.mxu0 0.0
  %770 = vmatpush.msra.mxu0 0.0
  %771 = vmatpush.msra.mxu0 0.0
  %772 = vmatpush.msra.mxu0 0.0
  %773 = vmatpush.msra.mxu0 0.0
  %774 = vmatpush.msra.mxu0 0.0
  %775 = vmatpush.msra.mxu0 0.0
  %776 = vmatpush.msra.mxu0 0.0
  %777 = vmatpush.msra.mxu0 0.0
  %778 = vmatpush.msra.mxu0 0.0
  %779 = vmatpush.msra.mxu0 0.0
  %v780 = vand.u32 %v694, 4294901760
  %v781 = vsub.f32 %v694, %v780
  %782 = vmatpush.msra.mxu0 %v781
  %v783 = vand.u32 %v691, 4294901760
  %v784 = vsub.f32 %v691, %v783
  %785 = vmatpush.msra.mxu0 %v784
  %v786 = vand.u32 %v297, 4294901760
  %v787 = vsub.f32 %v297, %v786
  %788 = vmatmul.f32.gmra.mxu0 %v787
  %v789 = vpop.f32.mrf.mxu0
  %v790 = vadd.f32 %v760, %v789
  %v791 = vand.u32 %v300, 4294901760
  %v792 = vsub.f32 %v300, %v791
  %793 = vmatmul.f32.gmra.mxu0 %v792
  %v794 = vpop.f32.mrf.mxu0
  %v795 = vadd.f32 %v764, %v794
  %796 = vdwg.mxu0
  %797 = vmatpush.msra.mxu0 0.0
  %798 = vmatpush.msra.mxu0 0.0
  %799 = vmatpush.msra.mxu0 0.0
  %800 = vmatpush.msra.mxu0 0.0
  %801 = vmatpush.msra.mxu0 0.0
  %802 = vmatpush.msra.mxu0 0.0
  %803 = vmatpush.msra.mxu0 0.0
  %804 = vmatpush.msra.mxu0 0.0
  %805 = vmatpush.msra.mxu0 0.0
  %806 = vmatpush.msra.mxu0 0.0
  %807 = vmatpush.msra.mxu0 0.0
  %808 = vmatpush.msra.mxu0 0.0
  %809 = vmatpush.msra.mxu0 0.0
  %810 = vmatpush.msra.mxu0 0.0
  %v811 = vand.u32 %v694, 4294901760
  %812 = vmatpush.msra.mxu0 %v811
  %v813 = vand.u32 %v691, 4294901760
  %814 = vmatpush.msra.mxu0 %v813
  %v815 = vand.u32 %v297, 4294901760
  %v816 = vsub.f32 %v297, %v815
  %v817 = vand.u32 %v816, 4294901760
  %818 = vmatmul.f32.gmra.mxu0 %v817
  %v819 = vpop.f32.mrf.mxu0
  %v820 = vadd.f32 %v790, %v819
  %v821 = vand.u32 %v300, 4294901760
  %v822 = vsub.f32 %v300, %v821
  %v823 = vand.u32 %v822, 4294901760
  %824 = vmatmul.f32.gmra.mxu0 %v823
  %v825 = vpop.f32.mrf.mxu0
  %v826 = vadd.f32 %v795, %v825
  %827 = vdwg.mxu0
  %828 = vmatpush.msra.mxu0 0.0
  %829 = vmatpush.msra.mxu0 0.0
  %830 = vmatpush.msra.mxu0 0.0
  %831 = vmatpush.msra.mxu0 0.0
  %832 = vmatpush.msra.mxu0 0.0
  %833 = vmatpush.msra.mxu0 0.0
  %834 = vmatpush.msra.mxu0 0.0
  %835 = vmatpush.msra.mxu0 0.0
  %836 = vmatpush.msra.mxu0 0.0
  %837 = vmatpush.msra.mxu0 0.0
  %838 = vmatpush.msra.mxu0 0.0
  %839 = vmatpush.msra.mxu0 0.0
  %840 = vmatpush.msra.mxu0 0.0
  %841 = vmatpush.msra.mxu0 0.0
  %v842 = vand.u32 %v694, 4294901760
  %v843 = vsub.f32 %v694, %v842
  %v844 = vand.u32 %v843, 4294901760
  %845 = vmatpush.msra.mxu0 %v844
  %v846 = vand.u32 %v691, 4294901760
  %v847 = vsub.f32 %v691, %v846
  %v848 = vand.u32 %v847, 4294901760
  %849 = vmatpush.msra.mxu0 %v848
  %v850 = vand.u32 %v297, 4294901760
  %851 = vmatmul.f32.gmra.mxu0 %v850
  %v852 = vpop.f32.mrf.mxu0
  %v853 = vadd.f32 %v820, %v852
  %v854 = vand.u32 %v300, 4294901760
  %855 = vmatmul.f32.gmra.mxu0 %v854
  %v856 = vpop.f32.mrf.mxu0
  %v857 = vadd.f32 %v826, %v856
  %858 = vdwg.mxu0
  %859 = vmatpush.msra.mxu0 0.0
  %860 = vmatpush.msra.mxu0 0.0
  %861 = vmatpush.msra.mxu0 0.0
  %862 = vmatpush.msra.mxu0 0.0
  %863 = vmatpush.msra.mxu0 0.0
  %864 = vmatpush.msra.mxu0 0.0
  %865 = vmatpush.msra.mxu0 0.0
  %866 = vmatpush.msra.mxu0 0.0
  %867 = vmatpush.msra.mxu0 0.0
  %868 = vmatpush.msra.mxu0 0.0
  %869 = vmatpush.msra.mxu0 0.0
  %870 = vmatpush.msra.mxu0 0.0
  %871 = vmatpush.msra.mxu0 0.0
  %872 = vmatpush.msra.mxu0 0.0
  %v873 = vand.u32 %v694, 4294901760
  %874 = vmatpush.msra.mxu0 %v873
  %v875 = vand.u32 %v691, 4294901760
  %876 = vmatpush.msra.mxu0 %v875
  %v877 = vand.u32 %v297, 4294901760
  %878 = vmatmul.f32.gmra.mxu0 %v877
  %v879 = vpop.f32.mrf.mxu0
  %v880 = vadd.f32 %v853, %v879
  %v881 = vand.u32 %v300, 4294901760
  %882 = vmatmul.f32.gmra.mxu0 %v881
  %v883 = vpop.f32.mrf.mxu0
  %v884 = vadd.f32 %v857, %v883
  %885 = vdwg.mxu0
  %v886 = vmax.f32 %v880, 0.0
  %v887 = vmax.f32 %v884, 0.0
  %v888 = vld [vmem:[%s5] sm:$0x3]
  %v889 = vld [vmem:[%s6] sm:$0x3]
  %891 = vset.pattern.permute.xlu0 0
  %892 = vperm.xlu0 %891, %v889
  %v893 = vpop.permute.xlu0 %892
  %v896 = vsel %vm295, %v888, 0
  %v899 = vsel %vm302, %v887, 0
  %901 = vmatpush.msra.mxu0 0.0
  %902 = vmatpush.msra.mxu0 0.0
  %903 = vmatpush.msra.mxu0 0.0
  %904 = vmatpush.msra.mxu0 0.0
  %905 = vmatpush.msra.mxu0 0.0
  %906 = vmatpush.msra.mxu0 0.0
  %907 = vmatpush.msra.mxu0 0.0
  %908 = vmatpush.msra.mxu0 0.0
  %909 = vmatpush.msra.mxu0 0.0
  %910 = vmatpush.msra.mxu0 0.0
  %911 = vmatpush.msra.mxu0 0.0
  %912 = vmatpush.msra.mxu0 0.0
  %913 = vmatpush.msra.mxu0 0.0
  %914 = vmatpush.msra.mxu0 0.0
  %v915 = vand.u32 %v899, 4294901760
  %916 = vmatpush.msra.mxu0 %v915
  %v917 = vand.u32 %v886, 4294901760
  %918 = vmatpush.msra.mxu0 %v917
  %v919 = vand.u32 %v896, 4294901760
  %v920 = vsub.f32 %v896, %v919
  %v921 = vand.u32 %v920, 4294901760
  %v922 = vsub.f32 %v920, %v921
  %v923 = vand.u32 %v922, 4294901760
  %924 = vmatmul.f32.gmra.mxu0 %v923
  %v925 = vpop.f32.mrf.mxu0
  %v926 = vadd.f32 %v893, %v925
  %927 = vdwg.mxu0
  %928 = vmatpush.msra.mxu0 0.0
  %929 = vmatpush.msra.mxu0 0.0
  %930 = vmatpush.msra.mxu0 0.0
  %931 = vmatpush.msra.mxu0 0.0
  %932 = vmatpush.msra.mxu0 0.0
  %933 = vmatpush.msra.mxu0 0.0
  %934 = vmatpush.msra.mxu0 0.0
  %935 = vmatpush.msra.mxu0 0.0
  %936 = vmatpush.msra.mxu0 0.0
  %937 = vmatpush.msra.mxu0 0.0
  %938 = vmatpush.msra.mxu0 0.0
  %939 = vmatpush.msra.mxu0 0.0
  %940 = vmatpush.msra.mxu0 0.0
  %941 = vmatpush.msra.mxu0 0.0
  %v942 = vand.u32 %v899, 4294901760
  %v943 = vsub.f32 %v899, %v942
  %v944 = vand.u32 %v943, 4294901760
  %v945 = vsub.f32 %v943, %v944
  %v946 = vand.u32 %v945, 4294901760
  %947 = vmatpush.msra.mxu0 %v946
  %v948 = vand.u32 %v886, 4294901760
  %v949 = vsub.f32 %v886, %v948
  %v950 = vand.u32 %v949, 4294901760
  %v951 = vsub.f32 %v949, %v950
  %v952 = vand.u32 %v951, 4294901760
  %953 = vmatpush.msra.mxu0 %v952
  %v954 = vand.u32 %v896, 4294901760
  %955 = vmatmul.f32.gmra.mxu0 %v954
  %v956 = vpop.f32.mrf.mxu0
  %v957 = vadd.f32 %v926, %v956
  %958 = vdwg.mxu0
  %959 = vmatpush.msra.mxu0 0.0
  %960 = vmatpush.msra.mxu0 0.0
  %961 = vmatpush.msra.mxu0 0.0
  %962 = vmatpush.msra.mxu0 0.0
  %963 = vmatpush.msra.mxu0 0.0
  %964 = vmatpush.msra.mxu0 0.0
  %965 = vmatpush.msra.mxu0 0.0
  %966 = vmatpush.msra.mxu0 0.0
  %967 = vmatpush.msra.mxu0 0.0
  %968 = vmatpush.msra.mxu0 0.0
  %969 = vmatpush.msra.mxu0 0.0
  %970 = vmatpush.msra.mxu0 0.0
  %971 = vmatpush.msra.mxu0 0.0
  %972 = vmatpush.msra.mxu0 0.0
  %v973 = vand.u32 %v899, 4294901760
  %v974 = vsub.f32 %v899, %v973
  %975 = vmatpush.msra.mxu0 %v974
  %v976 = vand.u32 %v886, 4294901760
  %v977 = vsub.f32 %v886, %v976
  %978 = vmatpush.msra.mxu0 %v977
  %v979 = vand.u32 %v896, 4294901760
  %v980 = vsub.f32 %v896, %v979
  %981 = vmatmul.f32.gmra.mxu0 %v980
  %v982 = vpop.f32.mrf.mxu0
  %v983 = vadd.f32 %v957, %v982
  %984 = vdwg.mxu0
  %985 = vmatpush.msra.mxu0 0.0
  %986 = vmatpush.msra.mxu0 0.0
  %987 = vmatpush.msra.mxu0 0.0
  %988 = vmatpush.msra.mxu0 0.0
  %989 = vmatpush.msra.mxu0 0.0
  %990 = vmatpush.msra.mxu0 0.0
  %991 = vmatpush.msra.mxu0 0.0
  %992 = vmatpush.msra.mxu0 0.0
  %993 = vmatpush.msra.mxu0 0.0
  %994 = vmatpush.msra.mxu0 0.0
  %995 = vmatpush.msra.mxu0 0.0
  %996 = vmatpush.msra.mxu0 0.0
  %997 = vmatpush.msra.mxu0 0.0
  %998 = vmatpush.msra.mxu0 0.0
  %v999 = vand.u32 %v899, 4294901760
  %1000 = vmatpush.msra.mxu0 %v999
  %v1001 = vand.u32 %v886, 4294901760
  %1002 = vmatpush.msra.mxu0 %v1001
  %v1003 = vand.u32 %v896, 4294901760
  %v1004 = vsub.f32 %v896, %v1003
  %v1005 = vand.u32 %v1004, 4294901760
  %1006 = vmatmul.f32.gmra.mxu0 %v1005
  %v1007 = vpop.f32.mrf.mxu0
  %v1008 = vadd.f32 %v983, %v1007
  %1009 = vdwg.mxu0
  %1010 = vmatpush.msra.mxu0 0.0
  %1011 = vmatpush.msra.mxu0 0.0
  %1012 = vmatpush.msra.mxu0 0.0
  %1013 = vmatpush.msra.mxu0 0.0
  %1014 = vmatpush.msra.mxu0 0.0
  %1015 = vmatpush.msra.mxu0 0.0
  %1016 = vmatpush.msra.mxu0 0.0
  %1017 = vmatpush.msra.mxu0 0.0
  %1018 = vmatpush.msra.mxu0 0.0
  %1019 = vmatpush.msra.mxu0 0.0
  %1020 = vmatpush.msra.mxu0 0.0
  %1021 = vmatpush.msra.mxu0 0.0
  %1022 = vmatpush.msra.mxu0 0.0
  %1023 = vmatpush.msra.mxu0 0.0
  %v1024 = vand.u32 %v899, 4294901760
  %v1025 = vsub.f32 %v899, %v1024
  %v1026 = vand.u32 %v1025, 4294901760
  %1027 = vmatpush.msra.mxu0 %v1026
  %v1028 = vand.u32 %v886, 4294901760
  %v1029 = vsub.f32 %v886, %v1028
  %v1030 = vand.u32 %v1029, 4294901760
  %1031 = vmatpush.msra.mxu0 %v1030
  %v1032 = vand.u32 %v896, 4294901760
  %1033 = vmatmul.f32.gmra.mxu0 %v1032
  %v1034 = vpop.f32.mrf.mxu0
  %v1035 = vadd.f32 %v1008, %v1034
  %1036 = vdwg.mxu0
  %1037 = vmatpush.msra.mxu0 0.0
  %1038 = vmatpush.msra.mxu0 0.0
  %1039 = vmatpush.msra.mxu0 0.0
  %1040 = vmatpush.msra.mxu0 0.0
  %1041 = vmatpush.msra.mxu0 0.0
  %1042 = vmatpush.msra.mxu0 0.0
  %1043 = vmatpush.msra.mxu0 0.0
  %1044 = vmatpush.msra.mxu0 0.0
  %1045 = vmatpush.msra.mxu0 0.0
  %1046 = vmatpush.msra.mxu0 0.0
  %1047 = vmatpush.msra.mxu0 0.0
  %1048 = vmatpush.msra.mxu0 0.0
  %1049 = vmatpush.msra.mxu0 0.0
  %1050 = vmatpush.msra.mxu0 0.0
  %v1051 = vand.u32 %v899, 4294901760
  %1052 = vmatpush.msra.mxu0 %v1051
  %v1053 = vand.u32 %v886, 4294901760
  %1054 = vmatpush.msra.mxu0 %v1053
  %v1055 = vand.u32 %v896, 4294901760
  %1056 = vmatmul.f32.gmra.mxu0 %v1055
  %v1057 = vpop.f32.mrf.mxu0
  %v1058 = vadd.f32 %v1035, %v1057
  %1059 = vdwg.mxu0
  %1060 = vst [vmem:[%s7] sm:$0x3] %v1058
  // Predicated region
  $region30: #{linear_beta_forward.1} parent=0 // pred_check
    _
  $region31: #{linear_beta_forward.1} parent=0 // pred_check_branch
    %1062 = sbr.rel (0) target = $region33
  $region32: #{linear_beta_forward.1} parent=0 // pred_region
    _
  $region33: #{linear_beta_forward.1} parent=0 // pred_fallthru
    _
  // Predicated region
  $region34: #{linear_beta_forward.1} parent=0 // pred_check
    _
  $region35: #{linear_beta_forward.1} parent=0 // pred_check_branch
    %1064 = sbr.rel (0) target = $region37
  $region36: #{linear_beta_forward.1} parent=0 // pred_region
    _
  $region37: #{linear_beta_forward.1} parent=0 // pred_fallthru
    _

</llo_original>
